<compile_context>
chip_gen: v6e
topology: v6e:2x2x1
jax: 0.10.0
libtpu: 0.0.40
codegen_flags: <defaults>
</compile_context>

<pallas_src>
import functools

import jax
import jax.numpy as jnp
from jax.experimental import pallas as pl
from jax.experimental.pallas import tpu as pltpu


# ---------------------------------------------------------------------------
# Fused attention kernel: one batch element per grid step, (C, S) layout.
# ---------------------------------------------------------------------------
def _attention_kernel(x_ref, wp_ref, bp_ref, wo_ref, bo_ref, o_ref,
                      *, n_heads, d_k, scale):
    x = x_ref[0]                                   # (C, S) float32
    x_bf = x.astype(jnp.bfloat16)

    # QKV projection in transposed layout: qkv_t = Wp @ x  -> (3*nh*dk, S)
    # (PyTorch: qkv = x^T @ Wp^T; we keep everything channels-on-sublanes.)
    qkv = jnp.dot(wp_ref[...], x_bf,
                  preferred_element_type=jnp.float32) + bp_ref[...]

    head_out = []
    for h in range(n_heads):                       # static loop (n_heads is tiny)
        base = h * 3 * d_k
        q = qkv[base:base + d_k]                   # (dk, S)
        k = qkv[base + d_k:base + 2 * d_k]         # (dk, S)
        v = qkv[base + 2 * d_k:base + 3 * d_k]     # (dk, S)

        # Fold the softmax scale into q (dk*S muls instead of S*S).
        q_scaled = (q * scale).astype(jnp.bfloat16)

        # scores[i, j] = sum_d q[d, i] * k[d, j]   -> (S, S), lane-dense
        dn_qk = (((0,), (0,)), ((), ()))
        scores = jax.lax.dot_general(
            q_scaled, k.astype(jnp.bfloat16), dn_qk,
            preferred_element_type=jnp.float32)

        # softmax over keys (last axis), f32 stats, EUP reciprocal
        m = jnp.max(scores, axis=-1, keepdims=True)
        e = jnp.exp(scores - m)
        denom = jnp.sum(e, axis=-1, keepdims=True)
        attn = e * pl.reciprocal(denom, approx=True)           # (S, S)

        # res_t[d, i] = sum_j v[d, j] * attn[i, j]  -> (dk, S)
        dn_av = (((1,), (1,)), ((), ()))
        r = jax.lax.dot_general(
            v.astype(jnp.bfloat16), attn.astype(jnp.bfloat16), dn_av,
            preferred_element_type=jnp.float32)
        head_out.append(r)

    res_t = head_out[0] if n_heads == 1 else jnp.concatenate(head_out, axis=0)

    # Output projection + bias + residual, still in (C, S) layout.
    out = (jnp.dot(wo_ref[...], res_t.astype(jnp.bfloat16),
                   preferred_element_type=jnp.float32)
           + bo_ref[...] + x)
    o_ref[0] = out


def attention_block(x, proj_w, proj_b, out_w, out_b, *, n_heads=1, d_k=None):
    """x: (B, C, H, W) float32. Weights in PyTorch layout:
       proj_w (3*nh*dk, C), proj_b (3*nh*dk,), out_w (C, nh*dk), out_b (C,)."""
    B, C, H, W = x.shape
    if d_k is None:
        d_k = C
    S = H * W
    scale = float(d_k) ** -0.5

    xs = x.reshape(B, C, S)                        # free view, no transpose
    kern = functools.partial(_attention_kernel,
                             n_heads=n_heads, d_k=d_k, scale=scale)

    out = pl.pallas_call(
        kern,
        out_shape=jax.ShapeDtypeStruct((B, C, S), jnp.float32),
        grid=(B,),
        in_specs=[
            pl.BlockSpec((1, C, S), lambda b: (b, 0, 0)),
            pl.BlockSpec((3 * n_heads * d_k, C), lambda b: (0, 0)),
            pl.BlockSpec((3 * n_heads * d_k, 1), lambda b: (0, 0)),
            pl.BlockSpec((C, n_heads * d_k), lambda b: (0, 0)),
            pl.BlockSpec((C, 1), lambda b: (0, 0)),
        ],
        out_specs=pl.BlockSpec((1, C, S), lambda b: (b, 0, 0)),
        compiler_params=pltpu.CompilerParams(
            dimension_semantics=("parallel",),       # v7x megacore sharding
            vmem_limit_bytes=32 * 1024 * 1024,       # explicit (v5e default is 16 MiB)
        ),
    )(xs,
      proj_w.astype(jnp.bfloat16),                   # bf16 weights: half the DMA bytes
      proj_b.reshape(-1, 1).astype(jnp.float32),
      out_w.astype(jnp.bfloat16),
      out_b.reshape(-1, 1).astype(jnp.float32))

    return out.reshape(B, C, H, W)                   # free view back to NCHW


# ---------------------------------------------------------------------------
# Pure-JAX f32 reference (mirrors the PyTorch forward exactly).
# ---------------------------------------------------------------------------
def ref_attention_block(x, proj_w, proj_b, out_w, out_b, *, n_heads=1, d_k=None):
    B, C, H, W = x.shape
    if d_k is None:
        d_k = C
    S = H * W
    scale = float(d_k) ** -0.5
    xs = x.reshape(B, C, S).transpose(0, 2, 1)                 # (B, S, C)
    qkv = xs @ proj_w.T + proj_b                               # (B, S, 3*nh*dk)
    qkv = qkv.reshape(B, S, n_heads, 3 * d_k)
    q, k, v = jnp.split(qkv, 3, axis=-1)
    attn = jnp.einsum('bihd,bjhd->bijh', q, k) * scale
    attn = jax.nn.softmax(attn, axis=2)
    res = jnp.einsum('bijh,bjhd->bihd', attn, v)
    res = res.reshape(B, S, n_heads * d_k)
    res = res @ out_w.T + out_b + xs
    return res.transpose(0, 2, 1).reshape(B, C, H, W)


# ---------------------------------------------------------------------------
if __name__ == "__main__":
    # AttentionBlock(n_channels=32, n_heads=1, d_k=None -> 32, n_groups=32)
    n_channels, n_heads = 32, 1
    d_k = n_channels
    B, H, W = 2, 16, 16            # S = 256 -> lane-dense stores
    time_channels = 16

    key = jax.random.PRNGKey(0)
    keys = jax.random.split(key, 8)

    def n(k, shape, s=0.1):
        return (s * jax.random.normal(k, shape)).astype(jnp.float32)

    proj_w = n(keys[0], (3 * n_heads * d_k, n_channels))
    proj_b = n(keys[1], (3 * n_heads * d_k,))
    out_w = n(keys[2], (n_channels, n_heads * d_k))
    out_b = n(keys[3], (n_channels,))

    x = jax.random.normal(keys[4], (B, n_channels, H, W), dtype=jnp.float32)
    t = jax.random.normal(keys[5], (B, time_channels), dtype=jnp.float32)  # unused by forward()

    out = attention_block(x, proj_w, proj_b, out_w, out_b,
                          n_heads=n_heads, d_k=d_k)
    out = jax.block_until_ready(out)

    ref = jax.block_until_ready(
        ref_attention_block(x, proj_w, proj_b, out_w, out_b,
                            n_heads=n_heads, d_k=d_k))

    assert out.shape == (B, n_channels, H, W)
    # bf16 MXU operands with f32 accumulation -> loosen tolerance vs f32 reference.
    assert jnp.allclose(out, ref, rtol=2e-2, atol=2e-2), (
        float(jnp.max(jnp.abs(out - ref))))

    print("KERNEL_OK")
</pallas_src>

<mosaic_0001>
module attributes {stable_mosaic.version = 11 : i64} {
  func.func @_attention_kernel(%arg0: i32, %arg1: memref<1x32x256xf32, #tpu.memory_space<vmem>>, %arg2: memref<96x32xbf16, #tpu.memory_space<vmem>>, %arg3: memref<96x1xf32, #tpu.memory_space<vmem>>, %arg4: memref<32x32xbf16, #tpu.memory_space<vmem>>, %arg5: memref<32x1xf32, #tpu.memory_space<vmem>>, %arg6: memref<1x32x256xf32, #tpu.memory_space<vmem>>) attributes {dimension_semantics = [#tpu.dimension_semantics<parallel>], iteration_bounds = array<i64: 2>, scalar_prefetch = 0 : i64, scratch_operands = 0 : i64, tpu.core_type = #tpu.core_type<tc>, window_params = [{transform_indices = @transform_0, window_bounds = array<i64: 1, 32, 256>}, {pipeline_mode = #tpu.pipeline_mode<synchronous>, transform_indices = @transform_1, window_bounds = array<i64: 96, 32>}, {pipeline_mode = #tpu.pipeline_mode<synchronous>, transform_indices = @transform_2, window_bounds = array<i64: 96, 1>}, {pipeline_mode = #tpu.pipeline_mode<synchronous>, transform_indices = @transform_3, window_bounds = array<i64: 32, 32>}, {pipeline_mode = #tpu.pipeline_mode<synchronous>, transform_indices = @transform_4, window_bounds = array<i64: 32, 1>}, {transform_indices = @transform_5, window_bounds = array<i64: 1, 32, 256>}]} {
    %c0 = arith.constant 0 : index
    %c0_0 = arith.constant 0 : index
    %c0_1 = arith.constant 0 : index
    %0 = vector.load %arg1[%c0, %c0_0, %c0_1] : memref<1x32x256xf32, #tpu.memory_space<vmem>>, vector<1x32x256xf32>
    %1 = vector.shape_cast %0 : vector<1x32x256xf32> to vector<32x256xf32>
    %2 = arith.truncf %1 : vector<32x256xf32> to vector<32x256xbf16>
    %c0_2 = arith.constant 0 : index
    %c0_3 = arith.constant 0 : index
    %3 = vector.load %arg2[%c0_2, %c0_3] : memref<96x32xbf16, #tpu.memory_space<vmem>>, vector<96x32xbf16>
    %cst = arith.constant dense<0.000000e+00> : vector<96x256xf32>
    %4 = tpu.matmul %3, %2, %cst {dimension_numbers = #tpu.dot_dimension_numbers<[1], [0], [0], [1], [0, 0, 1, 1], [], []>} : vector<96x32xbf16>, vector<32x256xbf16>, vector<96x256xf32> -> vector<96x256xf32>
    %c0_4 = arith.constant 0 : index
    %c0_5 = arith.constant 0 : index
    %5 = vector.load %arg3[%c0_4, %c0_5] : memref<96x1xf32, #tpu.memory_space<vmem>>, vector<96x1xf32>
    %6 = vector.broadcast %5 : vector<96x1xf32> to vector<96x256xf32>
    %7 = arith.addf %4, %6 : vector<96x256xf32>
    %8 = vector.extract_strided_slice %7 {offsets = [0, 0], sizes = [32, 256], strides = [1, 1]} : vector<96x256xf32> to vector<32x256xf32>
    %9 = vector.extract_strided_slice %7 {offsets = [32, 0], sizes = [32, 256], strides = [1, 1]} : vector<96x256xf32> to vector<32x256xf32>
    %10 = vector.extract_strided_slice %7 {offsets = [64, 0], sizes = [32, 256], strides = [1, 1]} : vector<96x256xf32> to vector<32x256xf32>
    %cst_6 = arith.constant 0.176776692 : f32
    %11 = vector.broadcast %cst_6 : f32 to vector<32x256xf32>
    %12 = arith.mulf %8, %11 : vector<32x256xf32>
    %13 = arith.truncf %12 : vector<32x256xf32> to vector<32x256xbf16>
    %14 = arith.truncf %9 : vector<32x256xf32> to vector<32x256xbf16>
    %cst_7 = arith.constant dense<0.000000e+00> : vector<256x256xf32>
    %15 = tpu.matmul %13, %14, %cst_7 {dimension_numbers = #tpu.dot_dimension_numbers<[0], [0], [1], [1], [0, 1, 1, 1], [], []>} : vector<32x256xbf16>, vector<32x256xbf16>, vector<256x256xf32> -> vector<256x256xf32>
    %cst_8 = arith.constant dense<0xFF800000> : vector<256xf32>
    %16 = vector.multi_reduction <maximumf>, %15, %cst_8 [1] : vector<256x256xf32> to vector<256xf32>
    %17 = vector.shape_cast %16 : vector<256xf32> to vector<256x1xf32>
    %18 = vector.broadcast %17 : vector<256x1xf32> to vector<256x256xf32>
    %19 = arith.subf %15, %18 : vector<256x256xf32>
    %20 = math.exp %19 : vector<256x256xf32>
    %cst_9 = arith.constant dense<0.000000e+00> : vector<256xf32>
    %21 = vector.multi_reduction <add>, %20, %cst_9 [1] : vector<256x256xf32> to vector<256xf32>
    %22 = vector.shape_cast %21 : vector<256xf32> to vector<256x1xf32>
    %23 = tpu.reciprocal %22 {approx = true} : vector<256x1xf32> -> vector<256x1xf32>
    %24 = vector.broadcast %23 : vector<256x1xf32> to vector<256x256xf32>
    %25 = arith.mulf %20, %24 : vector<256x256xf32>
    %26 = arith.truncf %10 : vector<32x256xf32> to vector<32x256xbf16>
    %27 = arith.truncf %25 : vector<256x256xf32> to vector<256x256xbf16>
    %cst_10 = arith.constant dense<0.000000e+00> : vector<32x256xf32>
    %28 = tpu.matmul %26, %27, %cst_10 {dimension_numbers = #tpu.dot_dimension_numbers<[1], [1], [0], [0], [0, 0, 1, 0], [], []>} : vector<32x256xbf16>, vector<256x256xbf16>, vector<32x256xf32> -> vector<32x256xf32>
    %c0_11 = arith.constant 0 : index
    %c0_12 = arith.constant 0 : index
    %29 = vector.load %arg4[%c0_11, %c0_12] : memref<32x32xbf16, #tpu.memory_space<vmem>>, vector<32x32xbf16>
    %30 = arith.truncf %28 : vector<32x256xf32> to vector<32x256xbf16>
    %cst_13 = arith.constant dense<0.000000e+00> : vector<32x256xf32>
    %31 = tpu.matmul %29, %30, %cst_13 {dimension_numbers = #tpu.dot_dimension_numbers<[1], [0], [0], [1], [0, 0, 1, 1], [], []>} : vector<32x32xbf16>, vector<32x256xbf16>, vector<32x256xf32> -> vector<32x256xf32>
    %c0_14 = arith.constant 0 : index
    %c0_15 = arith.constant 0 : index
    %32 = vector.load %arg5[%c0_14, %c0_15] : memref<32x1xf32, #tpu.memory_space<vmem>>, vector<32x1xf32>
    %33 = vector.broadcast %32 : vector<32x1xf32> to vector<32x256xf32>
    %34 = arith.addf %31, %33 : vector<32x256xf32>
    %35 = arith.addf %34, %1 : vector<32x256xf32>
    %c0_16 = arith.constant 0 : index
    %c0_17 = arith.constant 0 : index
    %c0_18 = arith.constant 0 : index
    %36 = vector.load %arg6[%c0_16, %c0_17, %c0_18] : memref<1x32x256xf32, #tpu.memory_space<vmem>>, vector<1x32x256xf32>
    %37 = vector.shape_cast %36 : vector<1x32x256xf32> to vector<32x256xf32>
    %38 = vector.shape_cast %35 : vector<32x256xf32> to vector<1x32x256xf32>
    tpu.vector_store %arg6[%c0_16, %c0_17, %c0_18], %38 {strides = array<i32>} : memref<1x32x256xf32, #tpu.memory_space<vmem>>, vector<1x32x256xf32>,
    return
  }
  func.func @transform_0(%arg0: i32) -> (i32, i32, i32) {
    %c0_i32 = arith.constant 0 : i32
    %c0_i32_0 = arith.constant 0 : i32
    %c0_i32_1 = arith.constant 0 : i32
    return %arg0, %c0_i32, %c0_i32_0 : i32, i32, i32
  }
  func.func @transform_1(%arg0: i32) -> (i32, i32) {
    %c0_i32 = arith.constant 0 : i32
    %c0_i32_0 = arith.constant 0 : i32
    %c0_i32_1 = arith.constant 0 : i32
    return %c0_i32, %c0_i32_0 : i32, i32
  }
  func.func @transform_2(%arg0: i32) -> (i32, i32) {
    %c0_i32 = arith.constant 0 : i32
    %c0_i32_0 = arith.constant 0 : i32
    %c0_i32_1 = arith.constant 0 : i32
    return %c0_i32, %c0_i32_0 : i32, i32
  }
  func.func @transform_3(%arg0: i32) -> (i32, i32) {
    %c0_i32 = arith.constant 0 : i32
    %c0_i32_0 = arith.constant 0 : i32
    %c0_i32_1 = arith.constant 0 : i32
    return %c0_i32, %c0_i32_0 : i32, i32
  }
  func.func @transform_4(%arg0: i32) -> (i32, i32) {
    %c0_i32 = arith.constant 0 : i32
    %c0_i32_0 = arith.constant 0 : i32
    %c0_i32_1 = arith.constant 0 : i32
    return %c0_i32, %c0_i32_0 : i32, i32
  }
  func.func @transform_5(%arg0: i32) -> (i32, i32, i32) {
    %c0_i32 = arith.constant 0 : i32
    %c0_i32_0 = arith.constant 0 : i32
    %c0_i32_1 = arith.constant 0 : i32
    return %arg0, %c0_i32, %c0_i32_0 : i32, i32, i32
  }
}

</mosaic_0001>

<llo_original>
// kernel: tpu_custom_call.1
$region0: #{tpu_custom_call.1}
  #allocation0 [shape = 'u32[]', space=smem, size = 0x4, offset = 0x4, fixed_abs, tag = 'smem constant byte address 0x4 - core index']
  #allocation1 [shape = 'u32[144,128]{1,0:T(1,128)}', space=vmem, size = 0x12000, scoped, tag = 'internal scratch']
  %s0 = inlined_call_operand.vmem [shape: f32[2,32,256], index: 0, kind: input, shape index: {}]
  %s1 = inlined_call_operand.vmem [shape: bf16[96,32], index: 1, kind: input, shape index: {}]
  %s2 = inlined_call_operand.vmem [shape: f32[96,1], index: 2, kind: input, shape index: {}]
  %s3 = inlined_call_operand.vmem [shape: bf16[32,32], index: 3, kind: input, shape index: {}]
  %s4 = inlined_call_operand.vmem [shape: f32[32,1], index: 4, kind: input, shape index: {}]
  %s5 = inlined_call_operand.hbm [shape: f32[2,32,256], index: 5, kind: output, shape index: {}]
  %s6 = sld [smem:[#allocation0]]
  $region53: #{tpu_custom_call.1} parent=0
    _
  %s8 = ssub.s32 1, %s6
  %s9 = scalar_select 0, %s8, %s6
  $region1: #{tpu_custom_call.1} parent=0
    #allocation2 [shape = 'u8[65536]{0}', space=vmem, size = 0x10000, scoped, tag = 'output window, operand 0']
    #allocation3 [shape = 's32[2]{0}', space=sflag, size = 0x8, scoped, tag = 'scoped memory for tpu_custom_call.1']
    %10 = vsyncpa [#allocation3], 0
    %s11 = scalar_lea.sflag [#allocation3], 1
    %12 = vsyncpa %s11, 0
    loop: start=0, step=1, limit=4
    $region2: #{tpu_custom_call.1} parent=1 // loop_pre_header
      _
    $region3: #{tpu_custom_call.1} parent=1 // loop_header
      %s14 = sphi 0, %s18
      %p15 = scmp.ge.s32.totalorder %s14, 4
      %s24 = sphi 0, %s26
      %s27 = sphi 0, %s24
      %s28 = sphi 0, %s27
      %s44 = sphi 0, %s28
      %s48 = sphi 0, %s48
      %s50 = sphi 0, %s48
      %s51 = sphi 0, %s50
      %s65 = sphi 0, %s51
      %s69 = sphi 0, %s69
      %s71 = sphi 0, %s69
      %s72 = sphi 0, %s71
      %s86 = sphi 0, %s72
      %s90 = sphi 0, %s90
      %s92 = sphi 0, %s90
      %s93 = sphi 0, %s92
      %s107 = sphi 0, %s93
      %s111 = sphi 0, %s111
      %s113 = sphi 0, %s111
      %s114 = sphi 0, %s113
      %s128 = sphi 0, %s114
      %s134 = sphi 0, %s136
      %s137 = sphi 0, %s134
      %s138 = sphi 0, %s137
      %s154 = sphi 0, %s138
    $region4: #{tpu_custom_call.1} parent=1 // loop_header_branch
      %17 = sbr.rel (%p15) target = $region8
    $region5: #{tpu_custom_call.1} parent=1 // loop_body
      %s19 = ssub.s32 %s14, 1
      %s20 = ssub.s32 %s14, 2
      %s21 = sadd.s32 %s14, 1
      %s22 = ssub.s32 %s14, %s21
      %p23 = scmp.eq.s32.totalorder %s22, 0
      %s25 = sadd.s32 %s24, 1
      %s26 = scalar_select %p23, %s24, %s25
      %p29 = pneg %p23
      %p30 = scmp.eq.s32.totalorder %s14, 1
      %p31 = por %p29, %p30
      %p32 = scmp.ne.s32.totalorder %s24, %s27
      %p33 = scmp.eq.s32.totalorder %s14, 0
      %p34 = por %p32, %p33
      %p35 = scmp.ne.s32.totalorder %s24, %s27
      %p36 = scmp.eq.s32.totalorder %s19, 1
      %p37 = por %p35, %p36
      %p38 = scmp.ne.s32.totalorder %s27, %s28
      %p39 = scmp.eq.s32.totalorder %s19, 0
      %p40 = por %p38, %p39
      %p41 = scmp.ne.s32.totalorder %s27, %s28
      %p42 = scmp.eq.s32.totalorder %s20, 1
      %p43 = por %p41, %p42
      %p45 = scmp.ne.s32.totalorder %s28, %s44
      %p46 = scmp.eq.s32.totalorder %s20, 0
      %p47 = por %p45, %p46
      %s49 = sadd.s32 %s48, 1
      %p52 = scmp.eq.s32.totalorder %s14, 1
      %p53 = scmp.ne.s32.totalorder %s48, %s50
      %p54 = scmp.eq.s32.totalorder %s14, 0
      %p55 = por %p53, %p54
      %p56 = scmp.ne.s32.totalorder %s48, %s50
      %p57 = scmp.eq.s32.totalorder %s19, 1
      %p58 = por %p56, %p57
      %p59 = scmp.ne.s32.totalorder %s50, %s51
      %p60 = scmp.eq.s32.totalorder %s19, 0
      %p61 = por %p59, %p60
      %p62 = scmp.ne.s32.totalorder %s50, %s51
      %p63 = scmp.eq.s32.totalorder %s20, 1
      %p64 = por %p62, %p63
      %p66 = scmp.ne.s32.totalorder %s51, %s65
      %p67 = scmp.eq.s32.totalorder %s20, 0
      %p68 = por %p66, %p67
      %s70 = sadd.s32 %s69, 1
      %p73 = scmp.eq.s32.totalorder %s14, 1
      %p74 = scmp.ne.s32.totalorder %s69, %s71
      %p75 = scmp.eq.s32.totalorder %s14, 0
      %p76 = por %p74, %p75
      %p77 = scmp.ne.s32.totalorder %s69, %s71
      %p78 = scmp.eq.s32.totalorder %s19, 1
      %p79 = por %p77, %p78
      %p80 = scmp.ne.s32.totalorder %s71, %s72
      %p81 = scmp.eq.s32.totalorder %s19, 0
      %p82 = por %p80, %p81
      %p83 = scmp.ne.s32.totalorder %s71, %s72
      %p84 = scmp.eq.s32.totalorder %s20, 1
      %p85 = por %p83, %p84
      %p87 = scmp.ne.s32.totalorder %s72, %s86
      %p88 = scmp.eq.s32.totalorder %s20, 0
      %p89 = por %p87, %p88
      %s91 = sadd.s32 %s90, 1
      %p94 = scmp.eq.s32.totalorder %s14, 1
      %p95 = scmp.ne.s32.totalorder %s90, %s92
      %p96 = scmp.eq.s32.totalorder %s14, 0
      %p97 = por %p95, %p96
      %p98 = scmp.ne.s32.totalorder %s90, %s92
      %p99 = scmp.eq.s32.totalorder %s19, 1
      %p100 = por %p98, %p99
      %p101 = scmp.ne.s32.totalorder %s92, %s93
      %p102 = scmp.eq.s32.totalorder %s19, 0
      %p103 = por %p101, %p102
      %p104 = scmp.ne.s32.totalorder %s92, %s93
      %p105 = scmp.eq.s32.totalorder %s20, 1
      %p106 = por %p104, %p105
      %p108 = scmp.ne.s32.totalorder %s93, %s107
      %p109 = scmp.eq.s32.totalorder %s20, 0
      %p110 = por %p108, %p109
      %s112 = sadd.s32 %s111, 1
      %p115 = scmp.eq.s32.totalorder %s14, 1
      %p116 = scmp.ne.s32.totalorder %s111, %s113
      %p117 = scmp.eq.s32.totalorder %s14, 0
      %p118 = por %p116, %p117
      %p119 = scmp.ne.s32.totalorder %s111, %s113
      %p120 = scmp.eq.s32.totalorder %s19, 1
      %p121 = por %p119, %p120
      %p122 = scmp.ne.s32.totalorder %s113, %s114
      %p123 = scmp.eq.s32.totalorder %s19, 0
      %p124 = por %p122, %p123
      %p125 = scmp.ne.s32.totalorder %s113, %s114
      %p126 = scmp.eq.s32.totalorder %s20, 1
      %p127 = por %p125, %p126
      %p129 = scmp.ne.s32.totalorder %s114, %s128
      %p130 = scmp.eq.s32.totalorder %s20, 0
      %p131 = por %p129, %p130
      %s132 = ssub.s32 %s14, %s21
      %p133 = scmp.eq.s32.totalorder %s132, 0
      %s135 = sadd.s32 %s134, 1
      %s136 = scalar_select %p133, %s134, %s135
      %p139 = pneg %p133
      %p140 = scmp.eq.s32.totalorder %s14, 1
      %p141 = por %p139, %p140
      %p142 = scmp.ne.s32.totalorder %s134, %s137
      %p143 = scmp.eq.s32.totalorder %s14, 0
      %p144 = por %p142, %p143
      %p145 = scmp.ne.s32.totalorder %s134, %s137
      %p146 = scmp.eq.s32.totalorder %s19, 1
      %p147 = por %p145, %p146
      %p148 = scmp.ne.s32.totalorder %s137, %s138
      %p149 = scmp.eq.s32.totalorder %s19, 0
      %p150 = por %p148, %p149
      %p151 = scmp.ne.s32.totalorder %s137, %s138
      %p152 = scmp.eq.s32.totalorder %s20, 1
      %p153 = por %p151, %p152
      %p155 = scmp.ne.s32.totalorder %s138, %s154
      %p156 = scmp.eq.s32.totalorder %s20, 0
      %p157 = por %p155, %p156
      %p158 = scmp.le.s32.totalorder 1, %s14
      %p159 = scmp.lt.s32.totalorder %s14, 3
      %p160 = pnand %p158, %p159
      %p161 = pneg %p160
      // Predicated region
      $region9: #{tpu_custom_call.1} parent=5 // pred_check
        _
      $region10: #{tpu_custom_call.1} parent=5 // pred_check_branch
        %163 = sbr.rel (%p160) target = $region12
      $region11: #{tpu_custom_call.1} parent=5 // pred_region
        %s164 = ssub.s32 %s14, 1
        // Predicated region
        $region13: #{tpu_custom_call.1} parent=11 // pred_check
          %p165 = pneg %p61
        $region14: #{tpu_custom_call.1} parent=11 // pred_check_branch
          %167 = sbr.rel (%p165) target = $region16
        $region15: #{tpu_custom_call.1} parent=11 // pred_region
          _
        $region16: #{tpu_custom_call.1} parent=11 // pred_fallthru
          _
        // Predicated region
        $region17: #{tpu_custom_call.1} parent=11 // pred_check
          %p168 = pneg %p82
        $region18: #{tpu_custom_call.1} parent=11 // pred_check_branch
          %170 = sbr.rel (%p168) target = $region20
        $region19: #{tpu_custom_call.1} parent=11 // pred_region
          _
        $region20: #{tpu_custom_call.1} parent=11 // pred_fallthru
          _
        // Predicated region
        $region21: #{tpu_custom_call.1} parent=11 // pred_check
          %p171 = pneg %p103
        $region22: #{tpu_custom_call.1} parent=11 // pred_check_branch
          %173 = sbr.rel (%p171) target = $region24
        $region23: #{tpu_custom_call.1} parent=11 // pred_region
          _
        $region24: #{tpu_custom_call.1} parent=11 // pred_fallthru
          _
        // Predicated region
        $region25: #{tpu_custom_call.1} parent=11 // pred_check
          %p174 = pneg %p124
        $region26: #{tpu_custom_call.1} parent=11 // pred_check_branch
          %176 = sbr.rel (%p174) target = $region28
        $region27: #{tpu_custom_call.1} parent=11 // pred_region
          _
        $region28: #{tpu_custom_call.1} parent=11 // pred_fallthru
          _
      $region12: #{tpu_custom_call.1} parent=5 // pred_fallthru
        _
      %p177 = scmp.lt.s32.totalorder %s14, 2
      // Predicated region
      $region29: #{tpu_custom_call.1} parent=5 // pred_check
        %p178 = pneg %p177
      $region30: #{tpu_custom_call.1} parent=5 // pred_check_branch
        %180 = sbr.rel (%p178) target = $region32
      $region31: #{tpu_custom_call.1} parent=5 // pred_region
        // Predicated region
        $region33: #{tpu_custom_call.1} parent=31 // pred_check
          %p181 = pneg %p34
        $region34: #{tpu_custom_call.1} parent=31 // pred_check_branch
          %183 = sbr.rel (%p181) target = $region36
        $region35: #{tpu_custom_call.1} parent=31 // pred_region
          %p184 = scmp.lt.s32.totalorder %s14, 1
          %s185 = scalar_select %p184, %s14, 1
          %s186 = smul.addr %s185, 8
          %s187 = smul.addr %s186, 8
          %s188 = scalar_lea.vmem %s0, %s187
        $region36: #{tpu_custom_call.1} parent=31 // pred_fallthru
          _
      $region32: #{tpu_custom_call.1} parent=5 // pred_fallthru
        _
      %p189 = scmp.le.s32.totalorder 1, %s14
      %p190 = scmp.lt.s32.totalorder %s14, 3
      %p191 = pnand %p189, %p190
      %p192 = pneg %p191
      // Predicated region
      $region37: #{tpu_custom_call.1} parent=5 // pred_check
        _
      $region38: #{tpu_custom_call.1} parent=5 // pred_check_branch
        %194 = sbr.rel (%p191) target = $region40
      $region39: #{tpu_custom_call.1} parent=5 // pred_region
        %s195 = ssub.s32 %s14, 1
        %p196 = scmp.lt.s32.totalorder %s19, 1
        %s197 = scalar_select %p196, %s19, 1
        %s198 = smul.addr %s197, 8
        %s199 = smul.addr %s198, 8
        %s200 = scalar_lea.vmem %s0, %s199
        %p201 = pneg %p40
        %p202 = pneg %p37
        %p203 = pneg %p61
        %p204 = pneg %p58
        %p205 = pneg %p82
        %p206 = pneg %p79
        %p207 = pneg %p103
        %p208 = pneg %p100
        %p209 = pneg %p124
        %p210 = pneg %p121
        %p211 = pneg %p150
        %p212 = pneg %p147
        %s213 = sand.u32 %s137, 1
        %s214 = scalar_lea.sflag [#allocation3], %s213
        %s215 = sand.u32 %s137, 1
        %s216 = smul.addr %s215, 64
        %s217 = scalar_lea.vmem [#allocation2], %s216
        %p218 = scmp.lt.s32.totalorder %s19, 1
        %s219 = scalar_select %p218, %s19, 1
        %s220 = smul.addr %s219, 8
        %s221 = smul.addr %s220, 8
        %s222 = scalar_lea.vmem %s0, %s221
        %v224 = vld [vmem:[%s222] sm:$0xff]
        %v225 = vld [vmem:[%s222 + $0x8] sm:$0xff]
        %v226 = vld [vmem:[%s222 + $0x10] sm:$0xff]
        %v227 = vld [vmem:[%s222 + $0x18] sm:$0xff]
        %v228 = vld [vmem:[%s222 + $0x20] sm:$0xff]
        %v229 = vld [vmem:[%s222 + $0x28] sm:$0xff]
        %v230 = vld [vmem:[%s222 + $0x30] sm:$0xff]
        %v231 = vld [vmem:[%s222 + $0x38] sm:$0xff]
        %v232 = vpack.c.bf16 %v226, %v224
        %v233 = vpack.c.bf16 %v227, %v225
        %v234 = vpack.c.bf16 %v230, %v228
        %v235 = vpack.c.bf16 %v231, %v229
        %v236 = vld [vmem:[%s1] sm:$0xf]
        %v237 = vld [vmem:[%s1 + $0x4] sm:$0xf]
        %v238 = vld [vmem:[%s1 + $0x8] sm:$0xf]
        %v239 = vld [vmem:[%s1 + $0xc] sm:$0xf]
        %v240 = vld [vmem:[%s1 + $0x10] sm:$0xf]
        %v241 = vld [vmem:[%s1 + $0x14] sm:$0xf]
        %v242 = vld [vmem:[%s1 + $0x18] sm:$0xf]
        %v243 = vld [vmem:[%s1 + $0x1c] sm:$0xf]
        %v244 = vld [vmem:[%s1 + $0x20] sm:$0xf]
        %v245 = vld [vmem:[%s1 + $0x24] sm:$0xf]
        %v246 = vld [vmem:[%s1 + $0x28] sm:$0xf]
        %v247 = vld [vmem:[%s1 + $0x2c] sm:$0xf]
        %v248 = vld [vmem:[%s2] sm:$0xff]
        %v249 = vld [vmem:[%s2 + $0x8] sm:$0xff]
        %v250 = vld [vmem:[%s2 + $0x10] sm:$0xff]
        %v251 = vld [vmem:[%s2 + $0x18] sm:$0xff]
        %v252 = vld [vmem:[%s2 + $0x20] sm:$0xff]
        %v253 = vld [vmem:[%s2 + $0x28] sm:$0xff]
        %v254 = vld [vmem:[%s2 + $0x30] sm:$0xff]
        %v255 = vld [vmem:[%s2 + $0x38] sm:$0xff]
        %v256 = vld [vmem:[%s2 + $0x40] sm:$0xff]
        %v257 = vld [vmem:[%s2 + $0x48] sm:$0xff]
        %v258 = vld [vmem:[%s2 + $0x50] sm:$0xff]
        %v259 = vld [vmem:[%s2 + $0x58] sm:$0xff]
        %261 = vset.pattern.permute.xlu0 0
        %262 = vperm.xlu0 %261, %v248
        %v263 = vpop.permute.xlu0 %262
        %266 = vset.pattern.permute.xlu0 0
        %267 = vperm.xlu0 %266, %v249
        %v268 = vpop.permute.xlu0 %267
        %271 = vset.pattern.permute.xlu0 0
        %272 = vperm.xlu0 %271, %v250
        %v273 = vpop.permute.xlu0 %272
        %276 = vset.pattern.permute.xlu0 0
        %277 = vperm.xlu0 %276, %v251
        %v278 = vpop.permute.xlu0 %277
        %281 = vset.pattern.permute.xlu0 0
        %282 = vperm.xlu0 %281, %v252
        %v283 = vpop.permute.xlu0 %282
        %286 = vset.pattern.permute.xlu0 0
        %287 = vperm.xlu0 %286, %v253
        %v288 = vpop.permute.xlu0 %287
        %291 = vset.pattern.permute.xlu0 0
        %292 = vperm.xlu0 %291, %v254
        %v293 = vpop.permute.xlu0 %292
        %296 = vset.pattern.permute.xlu0 0
        %297 = vperm.xlu0 %296, %v255
        %v298 = vpop.permute.xlu0 %297
        %301 = vset.pattern.permute.xlu0 0
        %302 = vperm.xlu0 %301, %v256
        %v303 = vpop.permute.xlu0 %302
        %306 = vset.pattern.permute.xlu0 0
        %307 = vperm.xlu0 %306, %v257
        %v308 = vpop.permute.xlu0 %307
        %311 = vset.pattern.permute.xlu0 0
        %312 = vperm.xlu0 %311, %v258
        %v313 = vpop.permute.xlu0 %312
        %316 = vset.pattern.permute.xlu0 0
        %317 = vperm.xlu0 %316, %v259
        %v318 = vpop.permute.xlu0 %317
        %v332 = vunpack.c.l.b16 %v236
        %v333 = vunpack.c.l.b16 %v237
        %v334 = vunpack.c.l.b16 %v238
        %v335 = vunpack.c.l.b16 %v239
        %v336 = vunpack.c.l.b16 %v240
        %v337 = vunpack.c.l.b16 %v241
        %v338 = vunpack.c.l.b16 %v242
        %v339 = vunpack.c.l.b16 %v243
        %v340 = vunpack.c.l.b16 %v244
        %v341 = vunpack.c.l.b16 %v245
        %v342 = vunpack.c.l.b16 %v246
        %v343 = vunpack.c.l.b16 %v247
        %v344 = vpack.c.b16 %v333, %v332
        %v345 = vpack.c.b16 %v335, %v334
        %v346 = vpack.c.b16 %v337, %v336
        %v347 = vpack.c.b16 %v339, %v338
        %v348 = vpack.c.b16 %v341, %v340
        %v349 = vpack.c.b16 %v343, %v342
        %vm350 = vcmask 261120
        %v352 = vsel %vm350, %v344, 0
        %v355 = vsel %vm350, %v345, 0
        %v358 = vsel %vm350, %v346, 0
        %v361 = vsel %vm350, %v347, 0
        %v364 = vsel %vm350, %v348, 0
        %v367 = vsel %vm350, %v349, 0
        %369 = vmatprep.subr.bf16.mxu0 0
        %370 = vmatpush1.bf16.msra.mxu0 0
        %371 = vmatprep.subr.bf16.mxu0 0
        %372 = vmatpush1.bf16.msra.mxu0 0
        %373 = vmatprep.subr.bf16.mxu0 0
        %374 = vmatpush1.bf16.msra.mxu0 0
        %375 = vmatprep.subr.bf16.mxu0 0
        %376 = vmatpush1.bf16.msra.mxu0 0
        %377 = vmatprep.subr.bf16.mxu0 0
        %378 = vmatpush1.bf16.msra.mxu0 0
        %379 = vmatprep.subr.bf16.mxu0 0
        %380 = vmatpush1.bf16.msra.mxu0 0
        %381 = vmatprep.subr.bf16.mxu0 %v235
        %382 = vmatpush1.bf16.msra.mxu0 %v234
        %383 = vmatprep.subr.bf16.mxu0 %v233
        %384 = vmatpush1.bf16.msra.mxu0 %v232
        %385 = vmatprep.subr.bf16.mxu0 0
        %386 = vmatpush2.bf16.msra.mxu0 0
        %387 = vmatprep.subr.bf16.mxu0 0
        %388 = vmatpush2.bf16.msra.mxu0 0
        %389 = vmatprep.subr.bf16.mxu0 0
        %390 = vmatpush2.bf16.msra.mxu0 0
        %391 = vmatprep.subr.bf16.mxu0 0
        %392 = vmatpush2.bf16.msra.mxu0 0
        %393 = vmatprep.subr.bf16.mxu0 0
        %394 = vmatpush2.bf16.msra.mxu0 0
        %395 = vmatprep.subr.bf16.mxu0 0
        %396 = vmatpush2.bf16.msra.mxu0 0
        %397 = vmatprep.subr.bf16.mxu0 0
        %398 = vmatpush2.bf16.msra.mxu0 0
        %399 = vmatprep.subr.bf16.mxu0 0
        %400 = vmatpush2.bf16.msra.mxu0 0
        %401 = vmatprep.mubr.bf16.mxu0 0
        %402 = vmatmul.mubr.bf16.gmra.mxu0 %v352
        %v403 = vpop.f32.mrf.mxu0
        %v404 = vadd.f32 %v263, %v403
        %v405 = vpop.f32.mrf.mxu0
        %v406 = vadd.f32 %v263, %v405
        %v407 = vpop.f32.mrf.mxu0
        %v408 = vadd.f32 %v268, %v407
        %v409 = vpop.f32.mrf.mxu0
        %v410 = vadd.f32 %v268, %v409
        %411 = vmatprep.mubr.bf16.mxu0 0
        %412 = vmatmul.mubr.bf16.gmra.mxu0 %v355
        %v413 = vpop.f32.mrf.mxu0
        %v414 = vadd.f32 %v273, %v413
        %v415 = vpop.f32.mrf.mxu0
        %v416 = vadd.f32 %v273, %v415
        %v417 = vpop.f32.mrf.mxu0
        %v418 = vadd.f32 %v278, %v417
        %v419 = vpop.f32.mrf.mxu0
        %v420 = vadd.f32 %v278, %v419
        %421 = vmatprep.mubr.bf16.mxu0 0
        %422 = vmatmul.mubr.bf16.gmra.mxu0 %v358
        %v423 = vpop.f32.mrf.mxu0
        %v424 = vadd.f32 %v283, %v423
        %v425 = vpop.f32.mrf.mxu0
        %v426 = vadd.f32 %v283, %v425
        %v427 = vpop.f32.mrf.mxu0
        %v428 = vadd.f32 %v288, %v427
        %v429 = vpop.f32.mrf.mxu0
        %v430 = vadd.f32 %v288, %v429
        %431 = vmatprep.mubr.bf16.mxu0 0
        %432 = vmatmul.mubr.bf16.gmra.mxu0 %v361
        %v433 = vpop.f32.mrf.mxu0
        %v434 = vadd.f32 %v293, %v433
        %v435 = vpop.f32.mrf.mxu0
        %v436 = vadd.f32 %v293, %v435
        %v437 = vpop.f32.mrf.mxu0
        %v438 = vadd.f32 %v298, %v437
        %v439 = vpop.f32.mrf.mxu0
        %v440 = vadd.f32 %v298, %v439
        %441 = vmatprep.mubr.bf16.mxu0 0
        %442 = vmatmul.mubr.bf16.gmra.mxu0 %v364
        %v443 = vpop.f32.mrf.mxu0
        %v444 = vadd.f32 %v303, %v443
        %v445 = vpop.f32.mrf.mxu0
        %v446 = vadd.f32 %v303, %v445
        %v447 = vpop.f32.mrf.mxu0
        %v448 = vadd.f32 %v308, %v447
        %v449 = vpop.f32.mrf.mxu0
        %v450 = vadd.f32 %v308, %v449
        %451 = vmatprep.mubr.bf16.mxu0 0
        %452 = vmatmul.mubr.bf16.gmra.mxu0 %v367
        %v453 = vpop.f32.mrf.mxu0
        %v454 = vadd.f32 %v313, %v453
        %v455 = vpop.f32.mrf.mxu0
        %v456 = vadd.f32 %v313, %v455
        %v457 = vpop.f32.mrf.mxu0
        %v458 = vadd.f32 %v318, %v457
        %v459 = vpop.f32.mrf.mxu0
        %v460 = vadd.f32 %v318, %v459
        %461 = vdwg.mxu0
        %v462 = vmul.f32 %v404, 0.17677669
        %v463 = vmul.f32 %v406, 0.17677669
        %v464 = vmul.f32 %v408, 0.17677669
        %v465 = vmul.f32 %v410, 0.17677669
        %v466 = vmul.f32 %v414, 0.17677669
        %v467 = vmul.f32 %v416, 0.17677669
        %v468 = vmul.f32 %v418, 0.17677669
        %v469 = vmul.f32 %v420, 0.17677669
        %v470 = vpack.c.bf16 %v464, %v462
        %v471 = vpack.c.bf16 %v465, %v463
        %v472 = vpack.c.bf16 %v468, %v466
        %v473 = vpack.c.bf16 %v469, %v467
        %v474 = vpack.c.bf16 %v428, %v424
        %v475 = vpack.c.bf16 %v430, %v426
        %v476 = vpack.c.bf16 %v438, %v434
        %v477 = vpack.c.bf16 %v440, %v436
        %478 = vxpose.xlu0.c.b16.start [1/8] %v470, 128
        %479 = vxpose.xlu0.c.b16.cont [2/8] %v472, 128
        %480 = vxpose.xlu0.c.b16.cont [3/8] 0, 128
        %481 = vxpose.xlu0.c.b16.cont [4/8] 0, 128
        %482 = vxpose.xlu0.c.b16.cont [5/8] 0, 128
        %483 = vxpose.xlu0.c.b16.cont [6/8] 0, 128
        %484 = vxpose.xlu0.c.b16.cont [7/8] 0, 128
        %485 = vxpose.xlu0.c.b16.end [8/8] 0, 128
        %v486 = vpop.trf.xlu0
        %v487 = vpop.trf.xlu0
        %v488 = vpop.trf.xlu0
        %v489 = vpop.trf.xlu0
        %v490 = vpop.trf.xlu0
        %v491 = vpop.trf.xlu0
        %v492 = vpop.trf.xlu0
        %v493 = vpop.trf.xlu0
        %494 = vxpose.xlu0.c.b16.start [1/8] %v471, 128
        %495 = vxpose.xlu0.c.b16.cont [2/8] %v473, 128
        %496 = vxpose.xlu0.c.b16.cont [3/8] 0, 128
        %497 = vxpose.xlu0.c.b16.cont [4/8] 0, 128
        %498 = vxpose.xlu0.c.b16.cont [5/8] 0, 128
        %499 = vxpose.xlu0.c.b16.cont [6/8] 0, 128
        %500 = vxpose.xlu0.c.b16.cont [7/8] 0, 128
        %501 = vxpose.xlu0.c.b16.end [8/8] 0, 128
        %v502 = vpop.trf.xlu0
        %v503 = vpop.trf.xlu0
        %v504 = vpop.trf.xlu0
        %v505 = vpop.trf.xlu0
        %v506 = vpop.trf.xlu0
        %v507 = vpop.trf.xlu0
        %v508 = vpop.trf.xlu0
        %v509 = vpop.trf.xlu0
        %v511 = vsel %vm350, %v486, 0
        %v514 = vsel %vm350, %v487, 0
        %v517 = vsel %vm350, %v488, 0
        %v520 = vsel %vm350, %v489, 0
        %v523 = vsel %vm350, %v490, 0
        %v526 = vsel %vm350, %v491, 0
        %v529 = vsel %vm350, %v492, 0
        %v532 = vsel %vm350, %v493, 0
        %v535 = vsel %vm350, %v502, 0
        %v538 = vsel %vm350, %v503, 0
        %v541 = vsel %vm350, %v504, 0
        %v544 = vsel %vm350, %v505, 0
        %v547 = vsel %vm350, %v506, 0
        %v550 = vsel %vm350, %v507, 0
        %v553 = vsel %vm350, %v508, 0
        %v556 = vsel %vm350, %v509, 0
        %558 = vmatprep.subr.bf16.mxu0 0
        %559 = vmatpush1.bf16.msra.mxu0 0
        %560 = vmatprep.subr.bf16.mxu0 0
        %561 = vmatpush1.bf16.msra.mxu0 0
        %562 = vmatprep.subr.bf16.mxu0 0
        %563 = vmatpush1.bf16.msra.mxu0 0
        %564 = vmatprep.subr.bf16.mxu0 0
        %565 = vmatpush1.bf16.msra.mxu0 0
        %566 = vmatprep.subr.bf16.mxu0 0
        %567 = vmatpush1.bf16.msra.mxu0 0
        %568 = vmatprep.subr.bf16.mxu0 0
        %569 = vmatpush1.bf16.msra.mxu0 0
        %570 = vmatprep.subr.bf16.mxu0 %v477
        %571 = vmatpush1.bf16.msra.mxu0 %v476
        %572 = vmatprep.subr.bf16.mxu0 %v475
        %573 = vmatpush1.bf16.msra.mxu0 %v474
        %574 = vmatprep.subr.bf16.mxu0 0
        %575 = vmatpush2.bf16.msra.mxu0 0
        %576 = vmatprep.subr.bf16.mxu0 0
        %577 = vmatpush2.bf16.msra.mxu0 0
        %578 = vmatprep.subr.bf16.mxu0 0
        %579 = vmatpush2.bf16.msra.mxu0 0
        %580 = vmatprep.subr.bf16.mxu0 0
        %581 = vmatpush2.bf16.msra.mxu0 0
        %582 = vmatprep.subr.bf16.mxu0 0
        %583 = vmatpush2.bf16.msra.mxu0 0
        %584 = vmatprep.subr.bf16.mxu0 0
        %585 = vmatpush2.bf16.msra.mxu0 0
        %586 = vmatprep.subr.bf16.mxu0 0
        %587 = vmatpush2.bf16.msra.mxu0 0
        %588 = vmatprep.subr.bf16.mxu0 0
        %589 = vmatpush2.bf16.msra.mxu0 0
        %590 = vmatprep.mubr.bf16.mxu0 0
        %591 = vmatmul.mubr.bf16.gmra.mxu0 %v511
        %v592 = vpop.f32.mrf.mxu0
        %v593 = vadd.f32 0.0, %v592
        %v594 = vpop.f32.mrf.mxu0
        %v595 = vadd.f32 0.0, %v594
        %v596 = vpop.f32.mrf.mxu0
        %v597 = vadd.f32 0.0, %v596
        %v598 = vpop.f32.mrf.mxu0
        %v599 = vadd.f32 0.0, %v598
        %600 = vmatprep.mubr.bf16.mxu0 0
        %601 = vmatmul.mubr.bf16.gmra.mxu0 %v514
        %v602 = vpop.f32.mrf.mxu0
        %v603 = vadd.f32 0.0, %v602
        %v604 = vpop.f32.mrf.mxu0
        %v605 = vadd.f32 0.0, %v604
        %v606 = vpop.f32.mrf.mxu0
        %v607 = vadd.f32 0.0, %v606
        %v608 = vpop.f32.mrf.mxu0
        %v609 = vadd.f32 0.0, %v608
        %610 = vmatprep.mubr.bf16.mxu0 0
        %611 = vmatmul.mubr.bf16.gmra.mxu0 %v517
        %v612 = vpop.f32.mrf.mxu0
        %v613 = vadd.f32 0.0, %v612
        %v614 = vpop.f32.mrf.mxu0
        %v615 = vadd.f32 0.0, %v614
        %v616 = vpop.f32.mrf.mxu0
        %v617 = vadd.f32 0.0, %v616
        %v618 = vpop.f32.mrf.mxu0
        %v619 = vadd.f32 0.0, %v618
        %620 = vmatprep.mubr.bf16.mxu0 0
        %621 = vmatmul.mubr.bf16.gmra.mxu0 %v520
        %v622 = vpop.f32.mrf.mxu0
        %v623 = vadd.f32 0.0, %v622
        %v624 = vpop.f32.mrf.mxu0
        %v625 = vadd.f32 0.0, %v624
        %v626 = vpop.f32.mrf.mxu0
        %v627 = vadd.f32 0.0, %v626
        %v628 = vpop.f32.mrf.mxu0
        %v629 = vadd.f32 0.0, %v628
        %630 = vmatprep.mubr.bf16.mxu0 0
        %631 = vmatmul.mubr.bf16.gmra.mxu0 %v523
        %v632 = vpop.f32.mrf.mxu0
        %v633 = vadd.f32 0.0, %v632
        %v634 = vpop.f32.mrf.mxu0
        %v635 = vadd.f32 0.0, %v634
        %v636 = vpop.f32.mrf.mxu0
        %v637 = vadd.f32 0.0, %v636
        %v638 = vpop.f32.mrf.mxu0
        %v639 = vadd.f32 0.0, %v638
        %640 = vmatprep.mubr.bf16.mxu0 0
        %641 = vmatmul.mubr.bf16.gmra.mxu0 %v526
        %v642 = vpop.f32.mrf.mxu0
        %v643 = vadd.f32 0.0, %v642
        %v644 = vpop.f32.mrf.mxu0
        %v645 = vadd.f32 0.0, %v644
        %v646 = vpop.f32.mrf.mxu0
        %v647 = vadd.f32 0.0, %v646
        %v648 = vpop.f32.mrf.mxu0
        %v649 = vadd.f32 0.0, %v648
        %650 = vmatprep.mubr.bf16.mxu0 0
        %651 = vmatmul.mubr.bf16.gmra.mxu0 %v529
        %v652 = vpop.f32.mrf.mxu0
        %v653 = vadd.f32 0.0, %v652
        %v654 = vpop.f32.mrf.mxu0
        %v655 = vadd.f32 0.0, %v654
        %v656 = vpop.f32.mrf.mxu0
        %v657 = vadd.f32 0.0, %v656
        %v658 = vpop.f32.mrf.mxu0
        %v659 = vadd.f32 0.0, %v658
        %660 = vmatprep.mubr.bf16.mxu0 0
        %661 = vmatmul.mubr.bf16.gmra.mxu0 %v532
        %v662 = vpop.f32.mrf.mxu0
        %v663 = vadd.f32 0.0, %v662
        %v664 = vpop.f32.mrf.mxu0
        %v665 = vadd.f32 0.0, %v664
        %v666 = vpop.f32.mrf.mxu0
        %v667 = vadd.f32 0.0, %v666
        %v668 = vpop.f32.mrf.mxu0
        %v669 = vadd.f32 0.0, %v668
        %670 = vmatprep.mubr.bf16.mxu0 0
        %671 = vmatmul.mubr.bf16.gmra.mxu0 %v535
        %v672 = vpop.f32.mrf.mxu0
        %v673 = vadd.f32 0.0, %v672
        %v674 = vpop.f32.mrf.mxu0
        %v675 = vadd.f32 0.0, %v674
        %v676 = vpop.f32.mrf.mxu0
        %v677 = vadd.f32 0.0, %v676
        %v678 = vpop.f32.mrf.mxu0
        %v679 = vadd.f32 0.0, %v678
        %680 = vmatprep.mubr.bf16.mxu0 0
        %681 = vmatmul.mubr.bf16.gmra.mxu0 %v538
        %v682 = vpop.f32.mrf.mxu0
        %v683 = vadd.f32 0.0, %v682
        %v684 = vpop.f32.mrf.mxu0
        %v685 = vadd.f32 0.0, %v684
        %v686 = vpop.f32.mrf.mxu0
        %v687 = vadd.f32 0.0, %v686
        %v688 = vpop.f32.mrf.mxu0
        %v689 = vadd.f32 0.0, %v688
        %690 = vmatprep.mubr.bf16.mxu0 0
        %691 = vmatmul.mubr.bf16.gmra.mxu0 %v541
        %v692 = vpop.f32.mrf.mxu0
        %v693 = vadd.f32 0.0, %v692
        %v694 = vpop.f32.mrf.mxu0
        %v695 = vadd.f32 0.0, %v694
        %v696 = vpop.f32.mrf.mxu0
        %v697 = vadd.f32 0.0, %v696
        %v698 = vpop.f32.mrf.mxu0
        %v699 = vadd.f32 0.0, %v698
        %700 = vmatprep.mubr.bf16.mxu0 0
        %701 = vmatmul.mubr.bf16.gmra.mxu0 %v544
        %v702 = vpop.f32.mrf.mxu0
        %v703 = vadd.f32 0.0, %v702
        %v704 = vpop.f32.mrf.mxu0
        %v705 = vadd.f32 0.0, %v704
        %v706 = vpop.f32.mrf.mxu0
        %v707 = vadd.f32 0.0, %v706
        %v708 = vpop.f32.mrf.mxu0
        %v709 = vadd.f32 0.0, %v708
        %710 = vmatprep.mubr.bf16.mxu0 0
        %711 = vmatmul.mubr.bf16.gmra.mxu0 %v547
        %v712 = vpop.f32.mrf.mxu0
        %v713 = vadd.f32 0.0, %v712
        %v714 = vpop.f32.mrf.mxu0
        %v715 = vadd.f32 0.0, %v714
        %v716 = vpop.f32.mrf.mxu0
        %v717 = vadd.f32 0.0, %v716
        %v718 = vpop.f32.mrf.mxu0
        %v719 = vadd.f32 0.0, %v718
        %720 = vmatprep.mubr.bf16.mxu0 0
        %721 = vmatmul.mubr.bf16.gmra.mxu0 %v550
        %v722 = vpop.f32.mrf.mxu0
        %v723 = vadd.f32 0.0, %v722
        %v724 = vpop.f32.mrf.mxu0
        %v725 = vadd.f32 0.0, %v724
        %v726 = vpop.f32.mrf.mxu0
        %v727 = vadd.f32 0.0, %v726
        %v728 = vpop.f32.mrf.mxu0
        %v729 = vadd.f32 0.0, %v728
        %730 = vmatprep.mubr.bf16.mxu0 0
        %731 = vmatmul.mubr.bf16.gmra.mxu0 %v553
        %v732 = vpop.f32.mrf.mxu0
        %v733 = vadd.f32 0.0, %v732
        %v734 = vpop.f32.mrf.mxu0
        %v735 = vadd.f32 0.0, %v734
        %v736 = vpop.f32.mrf.mxu0
        %v737 = vadd.f32 0.0, %v736
        %v738 = vpop.f32.mrf.mxu0
        %v739 = vadd.f32 0.0, %v738
        %740 = vmatprep.mubr.bf16.mxu0 0
        %741 = vmatmul.mubr.bf16.gmra.mxu0 %v556
        %v742 = vpop.f32.mrf.mxu0
        %v743 = vadd.f32 0.0, %v742
        %v744 = vpop.f32.mrf.mxu0
        %v745 = vadd.f32 0.0, %v744
        %v746 = vpop.f32.mrf.mxu0
        %v747 = vadd.f32 0.0, %v746
        %v748 = vpop.f32.mrf.mxu0
        %v749 = vadd.f32 0.0, %v748
        %750 = vdwg.mxu0
        %v751 = vmax.f32 %v593, %v595
        %752 = vmax.xlane.f32.xlu0 %v751
        %v753 = vpop.xlane.xlu0 %752
        %v754 = vmax.f32 %v597, %v599
        %755 = vmax.xlane.f32.xlu0 %v754
        %v756 = vpop.xlane.xlu0 %755
        %v757 = vmax.f32 %v603, %v605
        %758 = vmax.xlane.f32.xlu0 %v757
        %v759 = vpop.xlane.xlu0 %758
        %v760 = vmax.f32 %v607, %v609
        %761 = vmax.xlane.f32.xlu0 %v760
        %v762 = vpop.xlane.xlu0 %761
        %v763 = vmax.f32 %v613, %v615
        %764 = vmax.xlane.f32.xlu0 %v763
        %v765 = vpop.xlane.xlu0 %764
        %v766 = vmax.f32 %v617, %v619
        %767 = vmax.xlane.f32.xlu0 %v766
        %v768 = vpop.xlane.xlu0 %767
        %v769 = vmax.f32 %v623, %v625
        %770 = vmax.xlane.f32.xlu0 %v769
        %v771 = vpop.xlane.xlu0 %770
        %v772 = vmax.f32 %v627, %v629
        %773 = vmax.xlane.f32.xlu0 %v772
        %v774 = vpop.xlane.xlu0 %773
        %v775 = vmax.f32 %v633, %v635
        %776 = vmax.xlane.f32.xlu0 %v775
        %v777 = vpop.xlane.xlu0 %776
        %v778 = vmax.f32 %v637, %v639
        %779 = vmax.xlane.f32.xlu0 %v778
        %v780 = vpop.xlane.xlu0 %779
        %v781 = vmax.f32 %v643, %v645
        %782 = vmax.xlane.f32.xlu0 %v781
        %v783 = vpop.xlane.xlu0 %782
        %v784 = vmax.f32 %v647, %v649
        %785 = vmax.xlane.f32.xlu0 %v784
        %v786 = vpop.xlane.xlu0 %785
        %v787 = vmax.f32 %v653, %v655
        %788 = vmax.xlane.f32.xlu0 %v787
        %v789 = vpop.xlane.xlu0 %788
        %v790 = vmax.f32 %v657, %v659
        %791 = vmax.xlane.f32.xlu0 %v790
        %v792 = vpop.xlane.xlu0 %791
        %v793 = vmax.f32 %v663, %v665
        %794 = vmax.xlane.f32.xlu0 %v793
        %v795 = vpop.xlane.xlu0 %794
        %v796 = vmax.f32 %v667, %v669
        %797 = vmax.xlane.f32.xlu0 %v796
        %v798 = vpop.xlane.xlu0 %797
        %v799 = vmax.f32 %v673, %v675
        %800 = vmax.xlane.f32.xlu0 %v799
        %v801 = vpop.xlane.xlu0 %800
        %v802 = vmax.f32 %v677, %v679
        %803 = vmax.xlane.f32.xlu0 %v802
        %v804 = vpop.xlane.xlu0 %803
        %v805 = vmax.f32 %v683, %v685
        %806 = vmax.xlane.f32.xlu0 %v805
        %v807 = vpop.xlane.xlu0 %806
        %v808 = vmax.f32 %v687, %v689
        %809 = vmax.xlane.f32.xlu0 %v808
        %v810 = vpop.xlane.xlu0 %809
        %v811 = vmax.f32 %v693, %v695
        %812 = vmax.xlane.f32.xlu0 %v811
        %v813 = vpop.xlane.xlu0 %812
        %v814 = vmax.f32 %v697, %v699
        %815 = vmax.xlane.f32.xlu0 %v814
        %v816 = vpop.xlane.xlu0 %815
        %v817 = vmax.f32 %v703, %v705
        %818 = vmax.xlane.f32.xlu0 %v817
        %v819 = vpop.xlane.xlu0 %818
        %v820 = vmax.f32 %v707, %v709
        %821 = vmax.xlane.f32.xlu0 %v820
        %v822 = vpop.xlane.xlu0 %821
        %v823 = vmax.f32 %v713, %v715
        %824 = vmax.xlane.f32.xlu0 %v823
        %v825 = vpop.xlane.xlu0 %824
        %v826 = vmax.f32 %v717, %v719
        %827 = vmax.xlane.f32.xlu0 %v826
        %v828 = vpop.xlane.xlu0 %827
        %v829 = vmax.f32 %v723, %v725
        %830 = vmax.xlane.f32.xlu0 %v829
        %v831 = vpop.xlane.xlu0 %830
        %v832 = vmax.f32 %v727, %v729
        %833 = vmax.xlane.f32.xlu0 %v832
        %v834 = vpop.xlane.xlu0 %833
        %v835 = vmax.f32 %v733, %v735
        %836 = vmax.xlane.f32.xlu0 %v835
        %v837 = vpop.xlane.xlu0 %836
        %v838 = vmax.f32 %v737, %v739
        %839 = vmax.xlane.f32.xlu0 %v838
        %v840 = vpop.xlane.xlu0 %839
        %v841 = vmax.f32 %v743, %v745
        %842 = vmax.xlane.f32.xlu0 %v841
        %v843 = vpop.xlane.xlu0 %842
        %v844 = vmax.f32 %v747, %v749
        %845 = vmax.xlane.f32.xlu0 %v844
        %v846 = vpop.xlane.xlu0 %845
        %v847 = vsub.f32 %v593, %v753
        %v848 = vsub.f32 %v595, %v753
        %v849 = vsub.f32 %v597, %v756
        %v850 = vsub.f32 %v599, %v756
        %v851 = vsub.f32 %v603, %v759
        %v852 = vsub.f32 %v605, %v759
        %v853 = vsub.f32 %v607, %v762
        %v854 = vsub.f32 %v609, %v762
        %v855 = vsub.f32 %v613, %v765
        %v856 = vsub.f32 %v615, %v765
        %v857 = vsub.f32 %v617, %v768
        %v858 = vsub.f32 %v619, %v768
        %v859 = vsub.f32 %v623, %v771
        %v860 = vsub.f32 %v625, %v771
        %v861 = vsub.f32 %v627, %v774
        %v862 = vsub.f32 %v629, %v774
        %v863 = vsub.f32 %v633, %v777
        %v864 = vsub.f32 %v635, %v777
        %v865 = vsub.f32 %v637, %v780
        %v866 = vsub.f32 %v639, %v780
        %v867 = vsub.f32 %v643, %v783
        %v868 = vsub.f32 %v645, %v783
        %v869 = vsub.f32 %v647, %v786
        %v870 = vsub.f32 %v649, %v786
        %v871 = vsub.f32 %v653, %v789
        %v872 = vsub.f32 %v655, %v789
        %v873 = vsub.f32 %v657, %v792
        %v874 = vsub.f32 %v659, %v792
        %v875 = vsub.f32 %v663, %v795
        %v876 = vsub.f32 %v665, %v795
        %v877 = vsub.f32 %v667, %v798
        %v878 = vsub.f32 %v669, %v798
        %v879 = vsub.f32 %v673, %v801
        %v880 = vsub.f32 %v675, %v801
        %v881 = vsub.f32 %v677, %v804
        %v882 = vsub.f32 %v679, %v804
        %v883 = vsub.f32 %v683, %v807
        %v884 = vsub.f32 %v685, %v807
        %v885 = vsub.f32 %v687, %v810
        %v886 = vsub.f32 %v689, %v810
        %v887 = vsub.f32 %v693, %v813
        %v888 = vsub.f32 %v695, %v813
        %v889 = vsub.f32 %v697, %v816
        %v890 = vsub.f32 %v699, %v816
        %v891 = vsub.f32 %v703, %v819
        %v892 = vsub.f32 %v705, %v819
        %v893 = vsub.f32 %v707, %v822
        %v894 = vsub.f32 %v709, %v822
        %v895 = vsub.f32 %v713, %v825
        %v896 = vsub.f32 %v715, %v825
        %v897 = vsub.f32 %v717, %v828
        %v898 = vsub.f32 %v719, %v828
        %v899 = vsub.f32 %v723, %v831
        %v900 = vsub.f32 %v725, %v831
        %v901 = vsub.f32 %v727, %v834
        %v902 = vsub.f32 %v729, %v834
        %v903 = vsub.f32 %v733, %v837
        %v904 = vsub.f32 %v735, %v837
        %v905 = vsub.f32 %v737, %v840
        %v906 = vsub.f32 %v739, %v840
        %v907 = vsub.f32 %v743, %v843
        %v908 = vsub.f32 %v745, %v843
        %v909 = vsub.f32 %v747, %v846
        %v910 = vsub.f32 %v749, %v846
        %v911 = vmul.f32 %v847, 1.442695
        %v912 = vpow.pop %v911
        %v913 = vmul.f32 %v848, 1.442695
        %v914 = vpow.pop %v913
        %v915 = vmul.f32 %v849, 1.442695
        %v916 = vpow.pop %v915
        %v917 = vmul.f32 %v850, 1.442695
        %v918 = vpow.pop %v917
        %v919 = vmul.f32 %v851, 1.442695
        %v920 = vpow.pop %v919
        %v921 = vmul.f32 %v852, 1.442695
        %v922 = vpow.pop %v921
        %v923 = vmul.f32 %v853, 1.442695
        %v924 = vpow.pop %v923
        %v925 = vmul.f32 %v854, 1.442695
        %v926 = vpow.pop %v925
        %v927 = vmul.f32 %v855, 1.442695
        %v928 = vpow.pop %v927
        %v929 = vmul.f32 %v856, 1.442695
        %v930 = vpow.pop %v929
        %v931 = vmul.f32 %v857, 1.442695
        %v932 = vpow.pop %v931
        %v933 = vmul.f32 %v858, 1.442695
        %v934 = vpow.pop %v933
        %v935 = vmul.f32 %v859, 1.442695
        %v936 = vpow.pop %v935
        %v937 = vmul.f32 %v860, 1.442695
        %v938 = vpow.pop %v937
        %v939 = vmul.f32 %v861, 1.442695
        %v940 = vpow.pop %v939
        %v941 = vmul.f32 %v862, 1.442695
        %v942 = vpow.pop %v941
        %v943 = vmul.f32 %v863, 1.442695
        %v944 = vpow.pop %v943
        %v945 = vmul.f32 %v864, 1.442695
        %v946 = vpow.pop %v945
        %v947 = vmul.f32 %v865, 1.442695
        %v948 = vpow.pop %v947
        %v949 = vmul.f32 %v866, 1.442695
        %v950 = vpow.pop %v949
        %v951 = vmul.f32 %v867, 1.442695
        %v952 = vpow.pop %v951
        %v953 = vmul.f32 %v868, 1.442695
        %v954 = vpow.pop %v953
        %v955 = vmul.f32 %v869, 1.442695
        %v956 = vpow.pop %v955
        %v957 = vmul.f32 %v870, 1.442695
        %v958 = vpow.pop %v957
        %v959 = vmul.f32 %v871, 1.442695
        %v960 = vpow.pop %v959
        %v961 = vmul.f32 %v872, 1.442695
        %v962 = vpow.pop %v961
        %v963 = vmul.f32 %v873, 1.442695
        %v964 = vpow.pop %v963
        %v965 = vmul.f32 %v874, 1.442695
        %v966 = vpow.pop %v965
        %v967 = vmul.f32 %v875, 1.442695
        %v968 = vpow.pop %v967
        %v969 = vmul.f32 %v876, 1.442695
        %v970 = vpow.pop %v969
        %v971 = vmul.f32 %v877, 1.442695
        %v972 = vpow.pop %v971
        %v973 = vmul.f32 %v878, 1.442695
        %v974 = vpow.pop %v973
        %v975 = vmul.f32 %v879, 1.442695
        %v976 = vpow.pop %v975
        %v977 = vmul.f32 %v880, 1.442695
        %v978 = vpow.pop %v977
        %v979 = vmul.f32 %v881, 1.442695
        %v980 = vpow.pop %v979
        %v981 = vmul.f32 %v882, 1.442695
        %v982 = vpow.pop %v981
        %v983 = vmul.f32 %v883, 1.442695
        %v984 = vpow.pop %v983
        %v985 = vmul.f32 %v884, 1.442695
        %v986 = vpow.pop %v985
        %v987 = vmul.f32 %v885, 1.442695
        %v988 = vpow.pop %v987
        %v989 = vmul.f32 %v886, 1.442695
        %v990 = vpow.pop %v989
        %v991 = vmul.f32 %v887, 1.442695
        %v992 = vpow.pop %v991
        %v993 = vmul.f32 %v888, 1.442695
        %v994 = vpow.pop %v993
        %v995 = vmul.f32 %v889, 1.442695
        %v996 = vpow.pop %v995
        %v997 = vmul.f32 %v890, 1.442695
        %v998 = vpow.pop %v997
        %v999 = vmul.f32 %v891, 1.442695
        %v1000 = vpow.pop %v999
        %v1001 = vmul.f32 %v892, 1.442695
        %v1002 = vpow.pop %v1001
        %v1003 = vmul.f32 %v893, 1.442695
        %v1004 = vpow.pop %v1003
        %v1005 = vmul.f32 %v894, 1.442695
        %v1006 = vpow.pop %v1005
        %v1007 = vmul.f32 %v895, 1.442695
        %v1008 = vpow.pop %v1007
        %v1009 = vmul.f32 %v896, 1.442695
        %v1010 = vpow.pop %v1009
        %v1011 = vmul.f32 %v897, 1.442695
        %v1012 = vpow.pop %v1011
        %v1013 = vmul.f32 %v898, 1.442695
        %v1014 = vpow.pop %v1013
        %v1015 = vmul.f32 %v899, 1.442695
        %v1016 = vpow.pop %v1015
        %v1017 = vmul.f32 %v900, 1.442695
        %v1018 = vpow.pop %v1017
        %v1019 = vmul.f32 %v901, 1.442695
        %v1020 = vpow.pop %v1019
        %v1021 = vmul.f32 %v902, 1.442695
        %v1022 = vpow.pop %v1021
        %v1023 = vmul.f32 %v903, 1.442695
        %v1024 = vpow.pop %v1023
        %v1025 = vmul.f32 %v904, 1.442695
        %v1026 = vpow.pop %v1025
        %v1027 = vmul.f32 %v905, 1.442695
        %v1028 = vpow.pop %v1027
        %v1029 = vmul.f32 %v906, 1.442695
        %v1030 = vpow.pop %v1029
        %v1031 = vmul.f32 %v907, 1.442695
        %v1032 = vpow.pop %v1031
        %v1033 = vmul.f32 %v908, 1.442695
        %v1034 = vpow.pop %v1033
        %v1035 = vmul.f32 %v909, 1.442695
        %v1036 = vpow.pop %v1035
        %v1037 = vmul.f32 %v910, 1.442695
        %v1038 = vpow.pop %v1037
        %v1039 = vadd.f32 %v912, %v914
        %1040 = vadd.xlane.f32.xlu0 %v1039
        %v1041 = vpop.xlane.xlu0 %1040
        %v1042 = vadd.f32 %v916, %v918
        %1043 = vadd.xlane.f32.xlu0 %v1042
        %v1044 = vpop.xlane.xlu0 %1043
        %v1045 = vadd.f32 %v920, %v922
        %1046 = vadd.xlane.f32.xlu0 %v1045
        %v1047 = vpop.xlane.xlu0 %1046
        %v1048 = vadd.f32 %v924, %v926
        %1049 = vadd.xlane.f32.xlu0 %v1048
        %v1050 = vpop.xlane.xlu0 %1049
        %v1051 = vadd.f32 %v928, %v930
        %1052 = vadd.xlane.f32.xlu0 %v1051
        %v1053 = vpop.xlane.xlu0 %1052
        %v1054 = vadd.f32 %v932, %v934
        %1055 = vadd.xlane.f32.xlu0 %v1054
        %v1056 = vpop.xlane.xlu0 %1055
        %v1057 = vadd.f32 %v936, %v938
        %1058 = vadd.xlane.f32.xlu0 %v1057
        %v1059 = vpop.xlane.xlu0 %1058
        %v1060 = vadd.f32 %v940, %v942
        %1061 = vadd.xlane.f32.xlu0 %v1060
        %v1062 = vpop.xlane.xlu0 %1061
        %v1063 = vadd.f32 %v944, %v946
        %1064 = vadd.xlane.f32.xlu0 %v1063
        %v1065 = vpop.xlane.xlu0 %1064
        %v1066 = vadd.f32 %v948, %v950
        %1067 = vadd.xlane.f32.xlu0 %v1066
        %v1068 = vpop.xlane.xlu0 %1067
        %v1069 = vadd.f32 %v952, %v954
        %1070 = vadd.xlane.f32.xlu0 %v1069
        %v1071 = vpop.xlane.xlu0 %1070
        %v1072 = vadd.f32 %v956, %v958
        %1073 = vadd.xlane.f32.xlu0 %v1072
        %v1074 = vpop.xlane.xlu0 %1073
        %v1075 = vadd.f32 %v960, %v962
        %1076 = vadd.xlane.f32.xlu0 %v1075
        %v1077 = vpop.xlane.xlu0 %1076
        %v1078 = vadd.f32 %v964, %v966
        %1079 = vadd.xlane.f32.xlu0 %v1078
        %v1080 = vpop.xlane.xlu0 %1079
        %v1081 = vadd.f32 %v968, %v970
        %1082 = vadd.xlane.f32.xlu0 %v1081
        %v1083 = vpop.xlane.xlu0 %1082
        %v1084 = vadd.f32 %v972, %v974
        %1085 = vadd.xlane.f32.xlu0 %v1084
        %v1086 = vpop.xlane.xlu0 %1085
        %v1087 = vadd.f32 %v976, %v978
        %1088 = vadd.xlane.f32.xlu0 %v1087
        %v1089 = vpop.xlane.xlu0 %1088
        %v1090 = vadd.f32 %v980, %v982
        %1091 = vadd.xlane.f32.xlu0 %v1090
        %v1092 = vpop.xlane.xlu0 %1091
        %v1093 = vadd.f32 %v984, %v986
        %1094 = vadd.xlane.f32.xlu0 %v1093
        %v1095 = vpop.xlane.xlu0 %1094
        %v1096 = vadd.f32 %v988, %v990
        %1097 = vadd.xlane.f32.xlu0 %v1096
        %v1098 = vpop.xlane.xlu0 %1097
        %v1099 = vadd.f32 %v992, %v994
        %1100 = vadd.xlane.f32.xlu0 %v1099
        %v1101 = vpop.xlane.xlu0 %1100
        %v1102 = vadd.f32 %v996, %v998
        %1103 = vadd.xlane.f32.xlu0 %v1102
        %v1104 = vpop.xlane.xlu0 %1103
        %v1105 = vadd.f32 %v1000, %v1002
        %1106 = vadd.xlane.f32.xlu0 %v1105
        %v1107 = vpop.xlane.xlu0 %1106
        %v1108 = vadd.f32 %v1004, %v1006
        %1109 = vadd.xlane.f32.xlu0 %v1108
        %v1110 = vpop.xlane.xlu0 %1109
        %v1111 = vadd.f32 %v1008, %v1010
        %1112 = vadd.xlane.f32.xlu0 %v1111
        %v1113 = vpop.xlane.xlu0 %1112
        %v1114 = vadd.f32 %v1012, %v1014
        %1115 = vadd.xlane.f32.xlu0 %v1114
        %v1116 = vpop.xlane.xlu0 %1115
        %v1117 = vadd.f32 %v1016, %v1018
        %1118 = vadd.xlane.f32.xlu0 %v1117
        %v1119 = vpop.xlane.xlu0 %1118
        %v1120 = vadd.f32 %v1020, %v1022
        %1121 = vadd.xlane.f32.xlu0 %v1120
        %v1122 = vpop.xlane.xlu0 %1121
        %v1123 = vadd.f32 %v1024, %v1026
        %1124 = vadd.xlane.f32.xlu0 %v1123
        %v1125 = vpop.xlane.xlu0 %1124
        %v1126 = vadd.f32 %v1028, %v1030
        %1127 = vadd.xlane.f32.xlu0 %v1126
        %v1128 = vpop.xlane.xlu0 %1127
        %v1129 = vadd.f32 %v1032, %v1034
        %1130 = vadd.xlane.f32.xlu0 %v1129
        %v1131 = vpop.xlane.xlu0 %1130
        %v1132 = vadd.f32 %v1036, %v1038
        %1133 = vadd.xlane.f32.xlu0 %v1132
        %v1134 = vpop.xlane.xlu0 %1133
        %v1135 = vrcp.pop %v1041
        %v1136 = vrcp.pop %v1044
        %v1137 = vrcp.pop %v1047
        %v1138 = vrcp.pop %v1050
        %v1139 = vrcp.pop %v1053
        %v1140 = vrcp.pop %v1056
        %v1141 = vrcp.pop %v1059
        %v1142 = vrcp.pop %v1062
        %v1143 = vrcp.pop %v1065
        %v1144 = vrcp.pop %v1068
        %v1145 = vrcp.pop %v1071
        %v1146 = vrcp.pop %v1074
        %v1147 = vrcp.pop %v1077
        %v1148 = vrcp.pop %v1080
        %v1149 = vrcp.pop %v1083
        %v1150 = vrcp.pop %v1086
        %v1151 = vrcp.pop %v1089
        %v1152 = vrcp.pop %v1092
        %v1153 = vrcp.pop %v1095
        %v1154 = vrcp.pop %v1098
        %v1155 = vrcp.pop %v1101
        %v1156 = vrcp.pop %v1104
        %v1157 = vrcp.pop %v1107
        %v1158 = vrcp.pop %v1110
        %v1159 = vrcp.pop %v1113
        %v1160 = vrcp.pop %v1116
        %v1161 = vrcp.pop %v1119
        %v1162 = vrcp.pop %v1122
        %v1163 = vrcp.pop %v1125
        %v1164 = vrcp.pop %v1128
        %v1165 = vrcp.pop %v1131
        %v1166 = vrcp.pop %v1134
        %v1167 = vmul.f32 %v912, %v1135
        %v1168 = vmul.f32 %v914, %v1135
        %v1169 = vmul.f32 %v916, %v1136
        %v1170 = vmul.f32 %v918, %v1136
        %v1171 = vmul.f32 %v920, %v1137
        %v1172 = vmul.f32 %v922, %v1137
        %v1173 = vmul.f32 %v924, %v1138
        %v1174 = vmul.f32 %v926, %v1138
        %v1175 = vmul.f32 %v928, %v1139
        %v1176 = vmul.f32 %v930, %v1139
        %v1177 = vmul.f32 %v932, %v1140
        %v1178 = vmul.f32 %v934, %v1140
        %v1179 = vmul.f32 %v936, %v1141
        %v1180 = vmul.f32 %v938, %v1141
        %v1181 = vmul.f32 %v940, %v1142
        %v1182 = vmul.f32 %v942, %v1142
        %v1183 = vmul.f32 %v944, %v1143
        %v1184 = vmul.f32 %v946, %v1143
        %v1185 = vmul.f32 %v948, %v1144
        %v1186 = vmul.f32 %v950, %v1144
        %v1187 = vmul.f32 %v952, %v1145
        %v1188 = vmul.f32 %v954, %v1145
        %v1189 = vmul.f32 %v956, %v1146
        %v1190 = vmul.f32 %v958, %v1146
        %v1191 = vmul.f32 %v960, %v1147
        %v1192 = vmul.f32 %v962, %v1147
        %v1193 = vmul.f32 %v964, %v1148
        %v1194 = vmul.f32 %v966, %v1148
        %v1195 = vmul.f32 %v968, %v1149
        %v1196 = vmul.f32 %v970, %v1149
        %v1197 = vmul.f32 %v972, %v1150
        %v1198 = vmul.f32 %v974, %v1150
        %v1199 = vmul.f32 %v976, %v1151
        %v1200 = vmul.f32 %v978, %v1151
        %v1201 = vmul.f32 %v980, %v1152
        %v1202 = vmul.f32 %v982, %v1152
        %v1203 = vmul.f32 %v984, %v1153
        %v1204 = vmul.f32 %v986, %v1153
        %v1205 = vmul.f32 %v988, %v1154
        %v1206 = vmul.f32 %v990, %v1154
        %v1207 = vmul.f32 %v992, %v1155
        %v1208 = vmul.f32 %v994, %v1155
        %v1209 = vmul.f32 %v996, %v1156
        %v1210 = vmul.f32 %v998, %v1156
        %v1211 = vmul.f32 %v1000, %v1157
        %v1212 = vmul.f32 %v1002, %v1157
        %v1213 = vmul.f32 %v1004, %v1158
        %v1214 = vmul.f32 %v1006, %v1158
        %v1215 = vmul.f32 %v1008, %v1159
        %v1216 = vmul.f32 %v1010, %v1159
        %v1217 = vmul.f32 %v1012, %v1160
        %v1218 = vmul.f32 %v1014, %v1160
        %v1219 = vmul.f32 %v1016, %v1161
        %v1220 = vmul.f32 %v1018, %v1161
        %v1221 = vmul.f32 %v1020, %v1162
        %v1222 = vmul.f32 %v1022, %v1162
        %v1223 = vmul.f32 %v1024, %v1163
        %v1224 = vmul.f32 %v1026, %v1163
        %v1225 = vmul.f32 %v1028, %v1164
        %v1226 = vmul.f32 %v1030, %v1164
        %v1227 = vmul.f32 %v1032, %v1165
        %v1228 = vmul.f32 %v1034, %v1165
        %v1229 = vmul.f32 %v1036, %v1166
        %v1230 = vmul.f32 %v1038, %v1166
        %v1231 = vpack.c.bf16 %v448, %v444
        %v1232 = vpack.c.bf16 %v450, %v446
        %v1233 = vpack.c.bf16 %v458, %v454
        %v1234 = vpack.c.bf16 %v460, %v456
        %v1235 = vpack.c.bf16 %v1169, %v1167
        %v1236 = vpack.c.bf16 %v1170, %v1168
        %v1237 = vpack.c.bf16 %v1173, %v1171
        %v1238 = vpack.c.bf16 %v1174, %v1172
        %v1239 = vpack.c.bf16 %v1177, %v1175
        %v1240 = vpack.c.bf16 %v1178, %v1176
        %v1241 = vpack.c.bf16 %v1181, %v1179
        %v1242 = vpack.c.bf16 %v1182, %v1180
        %v1243 = vpack.c.bf16 %v1185, %v1183
        %v1244 = vpack.c.bf16 %v1186, %v1184
        %v1245 = vpack.c.bf16 %v1189, %v1187
        %v1246 = vpack.c.bf16 %v1190, %v1188
        %v1247 = vpack.c.bf16 %v1193, %v1191
        %v1248 = vpack.c.bf16 %v1194, %v1192
        %v1249 = vpack.c.bf16 %v1197, %v1195
        %v1250 = vpack.c.bf16 %v1198, %v1196
        %v1251 = vpack.c.bf16 %v1201, %v1199
        %v1252 = vpack.c.bf16 %v1202, %v1200
        %v1253 = vpack.c.bf16 %v1205, %v1203
        %v1254 = vpack.c.bf16 %v1206, %v1204
        %v1255 = vpack.c.bf16 %v1209, %v1207
        %v1256 = vpack.c.bf16 %v1210, %v1208
        %v1257 = vpack.c.bf16 %v1213, %v1211
        %v1258 = vpack.c.bf16 %v1214, %v1212
        %v1259 = vpack.c.bf16 %v1217, %v1215
        %v1260 = vpack.c.bf16 %v1218, %v1216
        %v1261 = vpack.c.bf16 %v1221, %v1219
        %v1262 = vpack.c.bf16 %v1222, %v1220
        %v1263 = vpack.c.bf16 %v1225, %v1223
        %v1264 = vpack.c.bf16 %v1226, %v1224
        %v1265 = vpack.c.bf16 %v1229, %v1227
        %v1266 = vpack.c.bf16 %v1230, %v1228
        %1267 = vmatprep.subr.bf16.mxu0 %v1250
        %1268 = vmatpush1.bf16.xpose.msra.mxu0 %v1249
        %1269 = vmatprep.subr.bf16.mxu0 %v1248
        %1270 = vmatpush1.bf16.xpose.msra.mxu0 %v1247
        %1271 = vmatprep.subr.bf16.mxu0 %v1246
        %1272 = vmatpush1.bf16.xpose.msra.mxu0 %v1245
        %1273 = vmatprep.subr.bf16.mxu0 %v1244
        %1274 = vmatpush1.bf16.xpose.msra.mxu0 %v1243
        %1275 = vmatprep.subr.bf16.mxu0 %v1242
        %1276 = vmatpush1.bf16.xpose.msra.mxu0 %v1241
        %1277 = vmatprep.subr.bf16.mxu0 %v1240
        %1278 = vmatpush1.bf16.xpose.msra.mxu0 %v1239
        %1279 = vmatprep.subr.bf16.mxu0 %v1238
        %1280 = vmatpush1.bf16.xpose.msra.mxu0 %v1237
        %1281 = vmatprep.subr.bf16.mxu0 %v1236
        %1282 = vmatpush1.bf16.xpose.msra.mxu0 %v1235
        %1283 = vmatprep.subr.bf16.mxu0 %v1266
        %1284 = vmatpush2.bf16.xpose.msra.mxu0 %v1265
        %1285 = vmatprep.subr.bf16.mxu0 %v1264
        %1286 = vmatpush2.bf16.xpose.msra.mxu0 %v1263
        %1287 = vmatprep.subr.bf16.mxu0 %v1262
        %1288 = vmatpush2.bf16.xpose.msra.mxu0 %v1261
        %1289 = vmatprep.subr.bf16.mxu0 %v1260
        %1290 = vmatpush2.bf16.xpose.msra.mxu0 %v1259
        %1291 = vmatprep.subr.bf16.mxu0 %v1258
        %1292 = vmatpush2.bf16.xpose.msra.mxu0 %v1257
        %1293 = vmatprep.subr.bf16.mxu0 %v1256
        %1294 = vmatpush2.bf16.xpose.msra.mxu0 %v1255
        %1295 = vmatprep.subr.bf16.mxu0 %v1254
        %1296 = vmatpush2.bf16.xpose.msra.mxu0 %v1253
        %1297 = vmatprep.subr.bf16.mxu0 %v1252
        %1298 = vmatpush2.bf16.xpose.msra.mxu0 %v1251
        %1299 = vmatprep.mubr.bf16.mxu0 %v1232
        %1300 = vmatmul.mubr.bf16.gmra.mxu0 %v1231
        %v1301 = vpop.f32.mrf.mxu0
        %v1302 = vadd.f32 0.0, %v1301
        %v1303 = vpop.f32.mrf.mxu0
        %v1304 = vadd.f32 0.0, %v1303
        %v1305 = vpop.f32.mrf.mxu0
        %v1306 = vadd.f32 0.0, %v1305
        %v1307 = vpop.f32.mrf.mxu0
        %v1308 = vadd.f32 0.0, %v1307
        %1309 = vmatprep.mubr.bf16.mxu0 %v1234
        %1310 = vmatmul.mubr.bf16.gmra.mxu0 %v1233
        %v1311 = vpop.f32.mrf.mxu0
        %v1312 = vadd.f32 0.0, %v1311
        %v1313 = vpop.f32.mrf.mxu0
        %v1314 = vadd.f32 0.0, %v1313
        %v1315 = vpop.f32.mrf.mxu0
        %v1316 = vadd.f32 0.0, %v1315
        %v1317 = vpop.f32.mrf.mxu0
        %v1318 = vadd.f32 0.0, %v1317
        %1319 = vdwg.mxu0
        %v1320 = vld [vmem:[%s3] sm:$0xf]
        %v1321 = vld [vmem:[%s3 + $0x4] sm:$0xf]
        %v1322 = vld [vmem:[%s3 + $0x8] sm:$0xf]
        %v1323 = vld [vmem:[%s3 + $0xc] sm:$0xf]
        %v1324 = vpack.c.bf16 %v1306, %v1302
        %v1325 = vpack.c.bf16 %v1308, %v1304
        %v1326 = vpack.c.bf16 %v1316, %v1312
        %v1327 = vpack.c.bf16 %v1318, %v1314
        %v1328 = vld [vmem:[%s4] sm:$0xff]
        %v1329 = vld [vmem:[%s4 + $0x8] sm:$0xff]
        %v1330 = vld [vmem:[%s4 + $0x10] sm:$0xff]
        %v1331 = vld [vmem:[%s4 + $0x18] sm:$0xff]
        %1333 = vset.pattern.permute.xlu0 0
        %1334 = vperm.xlu0 %1333, %v1328
        %v1335 = vpop.permute.xlu0 %1334
        %1338 = vset.pattern.permute.xlu0 0
        %1339 = vperm.xlu0 %1338, %v1329
        %v1340 = vpop.permute.xlu0 %1339
        %1343 = vset.pattern.permute.xlu0 0
        %1344 = vperm.xlu0 %1343, %v1330
        %v1345 = vpop.permute.xlu0 %1344
        %1348 = vset.pattern.permute.xlu0 0
        %1349 = vperm.xlu0 %1348, %v1331
        %v1350 = vpop.permute.xlu0 %1349
        %v1356 = vunpack.c.l.b16 %v1320
        %v1357 = vunpack.c.l.b16 %v1321
        %v1358 = vunpack.c.l.b16 %v1322
        %v1359 = vunpack.c.l.b16 %v1323
        %v1360 = vpack.c.b16 %v1357, %v1356
        %v1361 = vpack.c.b16 %v1359, %v1358
        %v1363 = vsel %vm350, %v1360, 0
        %v1366 = vsel %vm350, %v1361, 0
        %1368 = vmatprep.subr.bf16.mxu0 0
        %1369 = vmatpush1.bf16.msra.mxu0 0
        %1370 = vmatprep.subr.bf16.mxu0 0
        %1371 = vmatpush1.bf16.msra.mxu0 0
        %1372 = vmatprep.subr.bf16.mxu0 0
        %1373 = vmatpush1.bf16.msra.mxu0 0
        %1374 = vmatprep.subr.bf16.mxu0 0
        %1375 = vmatpush1.bf16.msra.mxu0 0
        %1376 = vmatprep.subr.bf16.mxu0 0
        %1377 = vmatpush1.bf16.msra.mxu0 0
        %1378 = vmatprep.subr.bf16.mxu0 0
        %1379 = vmatpush1.bf16.msra.mxu0 0
        %1380 = vmatprep.subr.bf16.mxu0 %v1327
        %1381 = vmatpush1.bf16.msra.mxu0 %v1326
        %1382 = vmatprep.subr.bf16.mxu0 %v1325
        %1383 = vmatpush1.bf16.msra.mxu0 %v1324
        %1384 = vmatprep.subr.bf16.mxu0 0
        %1385 = vmatpush2.bf16.msra.mxu0 0
        %1386 = vmatprep.subr.bf16.mxu0 0
        %1387 = vmatpush2.bf16.msra.mxu0 0
        %1388 = vmatprep.subr.bf16.mxu0 0
        %1389 = vmatpush2.bf16.msra.mxu0 0
        %1390 = vmatprep.subr.bf16.mxu0 0
        %1391 = vmatpush2.bf16.msra.mxu0 0
        %1392 = vmatprep.subr.bf16.mxu0 0
        %1393 = vmatpush2.bf16.msra.mxu0 0
        %1394 = vmatprep.subr.bf16.mxu0 0
        %1395 = vmatpush2.bf16.msra.mxu0 0
        %1396 = vmatprep.subr.bf16.mxu0 0
        %1397 = vmatpush2.bf16.msra.mxu0 0
        %1398 = vmatprep.subr.bf16.mxu0 0
        %1399 = vmatpush2.bf16.msra.mxu0 0
        %1400 = vmatprep.mubr.bf16.mxu0 0
        %1401 = vmatmul.mubr.bf16.gmra.mxu0 %v1363
        %v1402 = vpop.f32.mrf.mxu0
        %v1403 = vadd.f32 %v1335, %v1402
        %v1404 = vpop.f32.mrf.mxu0
        %v1405 = vadd.f32 %v1335, %v1404
        %v1406 = vpop.f32.mrf.mxu0
        %v1407 = vadd.f32 %v1340, %v1406
        %v1408 = vpop.f32.mrf.mxu0
        %v1409 = vadd.f32 %v1340, %v1408
        %1410 = vmatprep.mubr.bf16.mxu0 0
        %1411 = vmatmul.mubr.bf16.gmra.mxu0 %v1366
        %v1412 = vpop.f32.mrf.mxu0
        %v1413 = vadd.f32 %v1345, %v1412
        %v1414 = vpop.f32.mrf.mxu0
        %v1415 = vadd.f32 %v1345, %v1414
        %v1416 = vpop.f32.mrf.mxu0
        %v1417 = vadd.f32 %v1350, %v1416
        %v1418 = vpop.f32.mrf.mxu0
        %v1419 = vadd.f32 %v1350, %v1418
        %1420 = vdwg.mxu0
        %v1421 = vadd.f32 %v1403, %v224
        %v1422 = vadd.f32 %v1405, %v225
        %v1423 = vadd.f32 %v1407, %v226
        %v1424 = vadd.f32 %v1409, %v227
        %v1425 = vadd.f32 %v1413, %v228
        %v1426 = vadd.f32 %v1415, %v229
        %v1427 = vadd.f32 %v1417, %v230
        %v1428 = vadd.f32 %v1419, %v231
        %1429 = vst [vmem:[%s217] sm:$0xff] %v1421
        %1430 = vst [vmem:[%s217 + $0x8] sm:$0xff] %v1422
        %1431 = vst [vmem:[%s217 + $0x10] sm:$0xff] %v1423
        %1432 = vst [vmem:[%s217 + $0x18] sm:$0xff] %v1424
        %1433 = vst [vmem:[%s217 + $0x20] sm:$0xff] %v1425
        %1434 = vst [vmem:[%s217 + $0x28] sm:$0xff] %v1426
        %1435 = vst [vmem:[%s217 + $0x30] sm:$0xff] %v1427
        %1436 = vst [vmem:[%s217 + $0x38] sm:$0xff] %v1428
        %s1437 = sand.u32 %s137, 1
        %s1438 = scalar_lea.sflag [#allocation3], %s1437
        %s1439 = sand.u32 %s137, 1
        %s1440 = smul.addr %s1439, 64
        %s1441 = scalar_lea.vmem [#allocation2], %s1440
        // Predicated region
        $region41: #{tpu_custom_call.1} parent=39 // pred_check
          %p1442 = pneg %p147
        $region42: #{tpu_custom_call.1} parent=39 // pred_check_branch
          %1444 = sbr.rel (%p1442) target = $region44
        $region43: #{tpu_custom_call.1} parent=39 // pred_region
          %s1446 = ssub.s32 1024, 1024
          %1447 = vsyncadd %s1438, %s1446
          %s1448 = smul.addr %s19, 8
          %s1449 = smul.addr %s1448, 128
          %s1450 = scalar_lea.hbm %s5, %s1449
          %s1451 = sshll.u32 %s1441, 4
          %s1452 = int_to_ptr.vmem [resolvable:$true] %s1451
          %1457 = dma.vmem_to_hbm [thread:$0]  %s1452, 1024, %s1450, %s1438, 256, 256, 16
        $region44: #{tpu_custom_call.1} parent=39 // pred_fallthru
          _
      $region40: #{tpu_custom_call.1} parent=5 // pred_fallthru
        _
      %p1458 = scmp.le.s32.totalorder 2, %s14
      // Predicated region
      $region45: #{tpu_custom_call.1} parent=5 // pred_check
        %p1459 = pneg %p1458
      $region46: #{tpu_custom_call.1} parent=5 // pred_check_branch
        %1461 = sbr.rel (%p1459) target = $region48
      $region47: #{tpu_custom_call.1} parent=5 // pred_region
        %s1462 = ssub.s32 %s14, 2
        // Predicated region
        $region49: #{tpu_custom_call.1} parent=47 // pred_check
          %p1463 = pneg %p153
        $region50: #{tpu_custom_call.1} parent=47 // pred_check_branch
          %1465 = sbr.rel (%p1463) target = $region52
        $region51: #{tpu_custom_call.1} parent=47 // pred_region
          %s1466 = sand.u32 %s138, 1
          %s1467 = scalar_lea.sflag [#allocation3], %s1466
          %s1468 = sand.u32 %s138, 1
          %s1469 = smul.addr %s1468, 64
          %s1470 = scalar_lea.vmem [#allocation2], %s1469
          %1471 = dma.done %s1467, 1024
        $region52: #{tpu_custom_call.1} parent=47 // pred_fallthru
          _
      $region48: #{tpu_custom_call.1} parent=5 // pred_fallthru
        _
    $region6: #{tpu_custom_call.1} parent=1 // loop_footer
      %s18 = sadd.s32 1, %s14
    $region7: #{tpu_custom_call.1} parent=1 // loop_footer_branch
      %13 = sbr.rel target = $region3
    $region8: #{tpu_custom_call.1} parent=1 // loop_exit
      _
    %1472 = vsyncpa [#allocation3], 1
    %s1473 = scalar_lea.sflag [#allocation3], 1
    %1474 = vsyncpa %s1473, 1

</llo_original>
